<compile_context>
chip_gen: v6e
topology: v6e:2x2x1
jax: 0.10.0
libtpu: 0.0.40
codegen_flags: <defaults>
</compile_context>

<pallas_src>
import functools

import jax
import jax.numpy as jnp
from jax import lax
from jax.experimental import pallas as pl
from jax.experimental.pallas import tpu as pltpu


def _round_up(x, m):
    return (x + m - 1) // m * m


def _conv2d_im2col_kernel(xm_ref, xh_ref, w_ref, o_ref, xbuf_ref, cols_ref, *,
                          KH, KW, dh, dw, W_pad, C_in_p, TQ, HALO):
    # xm_ref:   (1, C_in_p, TQ)        main tile of the flattened padded image
    # xh_ref:   (1, C_in_p, HALO)      right halo of this tile
    # w_ref:    (C_out_p, K)           K = KH*KW*C_in_p, (kh, kw, c_in) order
    # o_ref:    (1, C_out_p, TQ)       wide stride-1 output tile (lane dense)
    # xbuf_ref: (C_in_p, TQ + HALO)    contiguous tile + halo (VMEM scratch)
    # cols_ref: (K, TQ)                im2col matrix           (VMEM scratch)

    # Stitch tile + halo; both stores are lane-aligned (TQ, HALO mult. of 128).
    xbuf_ref[:, :TQ] = xm_ref[0]
    xbuf_ref[:, TQ:] = xh_ref[0]

    # Each tap is a constant lane shift of the flattened image: build the
    # im2col matrix with aligned sublane stores (row offsets multiples of 8).
    for kh in range(KH):
        for kw in range(KW):
            off = kh * dh * W_pad + kw * dw           # static lane shift
            row = (kh * KW + kw) * C_in_p             # static, 8-aligned
            cols_ref[pl.ds(row, C_in_p), :] = xbuf_ref[:, off:off + TQ]

    # Single MXU matmul over the full K = KH*KW*C_in_p contraction.
    o_ref[0] = jnp.dot(
        w_ref[...], cols_ref[...], preferred_element_type=jnp.float32
    ).astype(o_ref.dtype)


def conv2d_pallas(x_nchw, weight_oihw, *, stride=1, padding=(0, 0),
                  dilation=(1, 1), tile_q=None):
    """2D convolution matching torch.nn.Conv2d(..., bias=False) semantics.

    x_nchw:      (N, C_in, H, W)
    weight_oihw: (C_out, C_in, KH, KW)
    returns:     (N, C_out, H_out, W_out)
    """
    N, C_in, H, W = x_nchw.shape
    C_out, C_in_w, KH, KW = weight_oihw.shape
    assert C_in == C_in_w
    sh = sw = stride
    ph, pw = padding
    dh, dw = dilation

    H_out = (H + 2 * ph - dh * (KH - 1) - 1) // sh + 1
    W_out = (W + 2 * pw - dw * (KW - 1) - 1) // sw + 1
    H_pad, W_pad = H + 2 * ph, W + 2 * pw

    # Stride-1 ("wide") output extents; the strided output is a slice of this.
    H1 = H_pad - dh * (KH - 1)
    W1 = W_pad - dw * (KW - 1)

    # Hardware-friendly padding: channels -> multiples of 8 sublanes.
    C_in_p = _round_up(C_in, 8)
    C_out_p = _round_up(C_out, 8)
    K = KH * KW * C_in_p

    Q1 = H1 * W_pad                                  # valid wide flat length
    max_off = (KH - 1) * dh * W_pad + (KW - 1) * dw  # largest tap lane shift
    HALO = _round_up(max(max_off, 1), 128)

    # Spatial tile (lane) width: biggest tile that keeps the per-step working
    # set (im2col + stitched input + double-buffered in/out blocks) well under
    # the default scoped-VMEM limit, capped so grid-step overhead stays small.
    if tile_q is not None:
        TQ = max(128, _round_up(tile_q, 128))
    else:
        bytes_per_lane = 4 * (K + 3 * C_in_p + 2 * C_out_p)
        cap = (24 * 1024 * 1024 // bytes_per_lane) // 128 * 128
        cap = max(128, min(16384, cap))
        TQ = min(_round_up(Q1, 128), cap)
    nq = -(-Q1 // TQ)                                # ceil
    Q_total = nq * TQ
    L_ext = Q_total + HALO                           # >= H_pad*W_pad always

    # --- plain-JAX glue: pad channels + spatial halo, flatten, build halo ---
    x_p = jnp.pad(x_nchw, ((0, 0), (0, C_in_p - C_in), (ph, ph), (pw, pw)))
    x_flat = x_p.reshape(N, C_in_p, H_pad * W_pad)
    x_ext = jnp.pad(x_flat, ((0, 0), (0, 0), (0, L_ext - H_pad * W_pad)))
    x_main = x_ext[:, :, :Q_total]
    # Halo of tile q = elements [(q+1)*TQ, (q+1)*TQ + HALO) of x_ext, laid out
    # contiguously so plain Blocked BlockSpecs suffice (no overlapping blocks).
    halo_idx = ((jnp.arange(nq)[:, None] + 1) * TQ
                + jnp.arange(HALO)[None, :]).reshape(-1)
    x_halo = jnp.take(x_ext, halo_idx, axis=2)       # (N, C_in_p, nq*HALO)

    w_p = jnp.pad(weight_oihw,
                  ((0, C_out_p - C_out), (0, C_in_p - C_in), (0, 0), (0, 0)))
    # (C_out_p, KH, KW, C_in_p) -> (C_out_p, K): matches the cols row ordering.
    w_mat = jnp.transpose(w_p, (0, 2, 3, 1)).reshape(C_out_p, K)

    kernel = functools.partial(
        _conv2d_im2col_kernel,
        KH=KH, KW=KW, dh=dh, dw=dw, W_pad=W_pad,
        C_in_p=C_in_p, TQ=TQ, HALO=HALO)

    wide = pl.pallas_call(
        kernel,
        out_shape=jax.ShapeDtypeStruct((N, C_out_p, Q_total), x_nchw.dtype),
        grid_spec=pltpu.PrefetchScalarGridSpec(
            num_scalar_prefetch=0,
            grid=(N, nq),                            # batch x spatial tiles
            in_specs=[
                pl.BlockSpec((1, C_in_p, TQ), lambda n, q: (n, 0, q)),
                pl.BlockSpec((1, C_in_p, HALO), lambda n, q: (n, 0, q)),
                pl.BlockSpec((C_out_p, K), lambda n, q: (0, 0)),
            ],
            out_specs=pl.BlockSpec((1, C_out_p, TQ), lambda n, q: (n, 0, q)),
            scratch_shapes=[
                pltpu.VMEM((C_in_p, TQ + HALO), x_nchw.dtype),
                pltpu.VMEM((K, TQ), x_nchw.dtype),
            ],
        ),
        # No cross-step accumulation: both axes independent -> megacore split.
        compiler_params=pltpu.CompilerParams(
            dimension_semantics=("parallel", "parallel")),
    )(x_main, x_halo, w_mat)

    # (N, C_out_p, Q_total) -> (N, C_out, H_out, W_out): drop channel/lane
    # padding, un-flatten (free reshape, already NCHW-flat), apply stride.
    # TODO(synk): stride > 1 discards rows/cols of the wide result in XLA; the
    # benchmark config uses stride=1 so no compute is wasted there.
    wide = wide[:, :C_out, :Q1].reshape(N, C_out, H1, W_pad)
    out = wide[:, :, :(H_out - 1) * sh + 1:sh, :(W_out - 1) * sw + 1:sw]
    return out


if __name__ == "__main__":
    # Small shapes consistent with the module's forward.
    N, C_in, H, W = 2, 4, 16, 16
    C_out = 8
    KH, KW = 3, 5          # asymmetric kernel
    stride = 1
    padding = (1, 2)       # (top/bottom, left/right)
    dilation = (2, 1)      # (height, width)

    key = jax.random.PRNGKey(0)
    kx, kw_key = jax.random.split(key)
    x = jax.random.normal(kx, (N, C_in, H, W), dtype=jnp.float32)
    # Deterministic stand-in for nn.Conv2d's kaiming-uniform init.
    fan_in = C_in * KH * KW
    bound = 1.0 / (fan_in ** 0.5)
    weight = jax.random.uniform(
        kw_key, (C_out, C_in, KH, KW), dtype=jnp.float32, minval=-bound, maxval=bound
    )

    # XLA reference convolution.
    ref = lax.conv_general_dilated(
        x, weight,
        window_strides=(stride, stride),
        padding=((padding[0], padding[0]), (padding[1], padding[1])),
        rhs_dilation=dilation,
        dimension_numbers=("NCHW", "OIHW", "NCHW"),
    )

    # 1) Default path (whole flat-spatial axis fits in one tile).
    out = conv2d_pallas(x, weight, stride=stride, padding=padding, dilation=dilation)
    out = jax.block_until_ready(out)
    assert out.shape == ref.shape, (out.shape, ref.shape)
    assert jnp.allclose(out, ref, atol=1e-4, rtol=1e-4), float(
        jnp.max(jnp.abs(out - ref))
    )

    # 2) Force a tiny spatial tile to exercise the multi-tile (halo) path.
    out_t = conv2d_pallas(x, weight, stride=stride, padding=padding,
                          dilation=dilation, tile_q=128)
    out_t = jax.block_until_ready(out_t)
    assert out_t.shape == ref.shape, (out_t.shape, ref.shape)
    assert jnp.allclose(out_t, ref, atol=1e-4, rtol=1e-4), float(
        jnp.max(jnp.abs(out_t - ref))
    )

    print("KERNEL_OK")
</pallas_src>

<mosaic_0001>
module attributes {stable_mosaic.version = 11 : i64} {
  func.func @_conv2d_im2col_kernel(%arg0: i32, %arg1: i32, %arg2: memref<1x8x384xf32, #tpu.memory_space<vmem>>, %arg3: memref<1x8x128xf32, #tpu.memory_space<vmem>>, %arg4: memref<8x120xf32, #tpu.memory_space<vmem>>, %arg5: memref<1x8x384xf32, #tpu.memory_space<vmem>>, %arg6: memref<8x512xf32, #tpu.memory_space<vmem>>, %arg7: memref<120x384xf32, #tpu.memory_space<vmem>>) attributes {dimension_semantics = [#tpu.dimension_semantics<parallel>, #tpu.dimension_semantics<parallel>], iteration_bounds = array<i64: 2, 1>, scalar_prefetch = 0 : i64, scratch_operands = 2 : i64, tpu.core_type = #tpu.core_type<tc>, window_params = [{transform_indices = @transform_0, window_bounds = array<i64: 1, 8, 384>}, {transform_indices = @transform_1, window_bounds = array<i64: 1, 8, 128>}, {pipeline_mode = #tpu.pipeline_mode<synchronous>, transform_indices = @transform_2, window_bounds = array<i64: 8, 120>}, {transform_indices = @transform_3, window_bounds = array<i64: 1, 8, 384>}]} {
    %c0 = arith.constant 0 : index
    %c0_0 = arith.constant 0 : index
    %c0_1 = arith.constant 0 : index
    %0 = vector.load %arg2[%c0, %c0_0, %c0_1] : memref<1x8x384xf32, #tpu.memory_space<vmem>>, vector<1x8x384xf32>
    %1 = vector.shape_cast %0 : vector<1x8x384xf32> to vector<8x384xf32>
    %c0_2 = arith.constant 0 : index
    %c0_3 = arith.constant 0 : index
    %2 = vector.load %arg6[%c0_2, %c0_3] : memref<8x512xf32, #tpu.memory_space<vmem>>, vector<8x384xf32>
    tpu.vector_store %arg6[%c0_2, %c0_3], %1 {strides = array<i32>} : memref<8x512xf32, #tpu.memory_space<vmem>>, vector<8x384xf32>,
    %c0_4 = arith.constant 0 : index
    %c0_5 = arith.constant 0 : index
    %c0_6 = arith.constant 0 : index
    %3 = vector.load %arg3[%c0_4, %c0_5, %c0_6] : memref<1x8x128xf32, #tpu.memory_space<vmem>>, vector<1x8x128xf32>
    %4 = vector.shape_cast %3 : vector<1x8x128xf32> to vector<8x128xf32>
    %c0_7 = arith.constant 0 : index
    %c384 = arith.constant 384 : index
    %5 = vector.load %arg6[%c0_7, %c384] : memref<8x512xf32, #tpu.memory_space<vmem>>, vector<8x128xf32>
    tpu.vector_store %arg6[%c0_7, %c384], %4 {strides = array<i32>} : memref<8x512xf32, #tpu.memory_space<vmem>>, vector<8x128xf32>,
    %c0_8 = arith.constant 0 : index
    %c0_9 = arith.constant 0 : index
    %6 = vector.load %arg6[%c0_8, %c0_9] : memref<8x512xf32, #tpu.memory_space<vmem>>, vector<8x384xf32>
    %c0_10 = arith.constant 0 : index
    %c0_11 = arith.constant 0 : index
    %7 = vector.load %arg7[%c0_10, %c0_11] : memref<120x384xf32, #tpu.memory_space<vmem>>, vector<8x384xf32>
    tpu.vector_store %arg7[%c0_10, %c0_11], %6 {strides = array<i32>} : memref<120x384xf32, #tpu.memory_space<vmem>>, vector<8x384xf32>,
    %c0_12 = arith.constant 0 : index
    %c1 = arith.constant 1 : index
    %8 = vector.load %arg6[%c0_12, %c1] : memref<8x512xf32, #tpu.memory_space<vmem>>, vector<8x384xf32>
    %c8 = arith.constant 8 : index
    %c0_13 = arith.constant 0 : index
    %9 = vector.load %arg7[%c8, %c0_13] : memref<120x384xf32, #tpu.memory_space<vmem>>, vector<8x384xf32>
    tpu.vector_store %arg7[%c8, %c0_13], %8 {strides = array<i32>} : memref<120x384xf32, #tpu.memory_space<vmem>>, vector<8x384xf32>,
    %c0_14 = arith.constant 0 : index
    %c2 = arith.constant 2 : index
    %10 = vector.load %arg6[%c0_14, %c2] : memref<8x512xf32, #tpu.memory_space<vmem>>, vector<8x384xf32>
    %c16 = arith.constant 16 : index
    %c0_15 = arith.constant 0 : index
    %11 = vector.load %arg7[%c16, %c0_15] : memref<120x384xf32, #tpu.memory_space<vmem>>, vector<8x384xf32>
    tpu.vector_store %arg7[%c16, %c0_15], %10 {strides = array<i32>} : memref<120x384xf32, #tpu.memory_space<vmem>>, vector<8x384xf32>,
    %c0_16 = arith.constant 0 : index
    %c3 = arith.constant 3 : index
    %12 = vector.load %arg6[%c0_16, %c3] : memref<8x512xf32, #tpu.memory_space<vmem>>, vector<8x384xf32>
    %c24 = arith.constant 24 : index
    %c0_17 = arith.constant 0 : index
    %13 = vector.load %arg7[%c24, %c0_17] : memref<120x384xf32, #tpu.memory_space<vmem>>, vector<8x384xf32>
    tpu.vector_store %arg7[%c24, %c0_17], %12 {strides = array<i32>} : memref<120x384xf32, #tpu.memory_space<vmem>>, vector<8x384xf32>,
    %c0_18 = arith.constant 0 : index
    %c4 = arith.constant 4 : index
    %14 = vector.load %arg6[%c0_18, %c4] : memref<8x512xf32, #tpu.memory_space<vmem>>, vector<8x384xf32>
    %c32 = arith.constant 32 : index
    %c0_19 = arith.constant 0 : index
    %15 = vector.load %arg7[%c32, %c0_19] : memref<120x384xf32, #tpu.memory_space<vmem>>, vector<8x384xf32>
    tpu.vector_store %arg7[%c32, %c0_19], %14 {strides = array<i32>} : memref<120x384xf32, #tpu.memory_space<vmem>>, vector<8x384xf32>,
    %c0_20 = arith.constant 0 : index
    %c40 = arith.constant 40 : index
    %16 = vector.load %arg6[%c0_20, %c40] : memref<8x512xf32, #tpu.memory_space<vmem>>, vector<8x384xf32>
    %c40_21 = arith.constant 40 : index
    %c0_22 = arith.constant 0 : index
    %17 = vector.load %arg7[%c40_21, %c0_22] : memref<120x384xf32, #tpu.memory_space<vmem>>, vector<8x384xf32>
    tpu.vector_store %arg7[%c40_21, %c0_22], %16 {strides = array<i32>} : memref<120x384xf32, #tpu.memory_space<vmem>>, vector<8x384xf32>,
    %c0_23 = arith.constant 0 : index
    %c41 = arith.constant 41 : index
    %18 = vector.load %arg6[%c0_23, %c41] : memref<8x512xf32, #tpu.memory_space<vmem>>, vector<8x384xf32>
    %c48 = arith.constant 48 : index
    %c0_24 = arith.constant 0 : index
    %19 = vector.load %arg7[%c48, %c0_24] : memref<120x384xf32, #tpu.memory_space<vmem>>, vector<8x384xf32>
    tpu.vector_store %arg7[%c48, %c0_24], %18 {strides = array<i32>} : memref<120x384xf32, #tpu.memory_space<vmem>>, vector<8x384xf32>,
    %c0_25 = arith.constant 0 : index
    %c42 = arith.constant 42 : index
    %20 = vector.load %arg6[%c0_25, %c42] : memref<8x512xf32, #tpu.memory_space<vmem>>, vector<8x384xf32>
    %c56 = arith.constant 56 : index
    %c0_26 = arith.constant 0 : index
    %21 = vector.load %arg7[%c56, %c0_26] : memref<120x384xf32, #tpu.memory_space<vmem>>, vector<8x384xf32>
    tpu.vector_store %arg7[%c56, %c0_26], %20 {strides = array<i32>} : memref<120x384xf32, #tpu.memory_space<vmem>>, vector<8x384xf32>,
    %c0_27 = arith.constant 0 : index
    %c43 = arith.constant 43 : index
    %22 = vector.load %arg6[%c0_27, %c43] : memref<8x512xf32, #tpu.memory_space<vmem>>, vector<8x384xf32>
    %c64 = arith.constant 64 : index
    %c0_28 = arith.constant 0 : index
    %23 = vector.load %arg7[%c64, %c0_28] : memref<120x384xf32, #tpu.memory_space<vmem>>, vector<8x384xf32>
    tpu.vector_store %arg7[%c64, %c0_28], %22 {strides = array<i32>} : memref<120x384xf32, #tpu.memory_space<vmem>>, vector<8x384xf32>,
    %c0_29 = arith.constant 0 : index
    %c44 = arith.constant 44 : index
    %24 = vector.load %arg6[%c0_29, %c44] : memref<8x512xf32, #tpu.memory_space<vmem>>, vector<8x384xf32>
    %c72 = arith.constant 72 : index
    %c0_30 = arith.constant 0 : index
    %25 = vector.load %arg7[%c72, %c0_30] : memref<120x384xf32, #tpu.memory_space<vmem>>, vector<8x384xf32>
    tpu.vector_store %arg7[%c72, %c0_30], %24 {strides = array<i32>} : memref<120x384xf32, #tpu.memory_space<vmem>>, vector<8x384xf32>,
    %c0_31 = arith.constant 0 : index
    %c80 = arith.constant 80 : index
    %26 = vector.load %arg6[%c0_31, %c80] : memref<8x512xf32, #tpu.memory_space<vmem>>, vector<8x384xf32>
    %c80_32 = arith.constant 80 : index
    %c0_33 = arith.constant 0 : index
    %27 = vector.load %arg7[%c80_32, %c0_33] : memref<120x384xf32, #tpu.memory_space<vmem>>, vector<8x384xf32>
    tpu.vector_store %arg7[%c80_32, %c0_33], %26 {strides = array<i32>} : memref<120x384xf32, #tpu.memory_space<vmem>>, vector<8x384xf32>,
    %c0_34 = arith.constant 0 : index
    %c81 = arith.constant 81 : index
    %28 = vector.load %arg6[%c0_34, %c81] : memref<8x512xf32, #tpu.memory_space<vmem>>, vector<8x384xf32>
    %c88 = arith.constant 88 : index
    %c0_35 = arith.constant 0 : index
    %29 = vector.load %arg7[%c88, %c0_35] : memref<120x384xf32, #tpu.memory_space<vmem>>, vector<8x384xf32>
    tpu.vector_store %arg7[%c88, %c0_35], %28 {strides = array<i32>} : memref<120x384xf32, #tpu.memory_space<vmem>>, vector<8x384xf32>,
    %c0_36 = arith.constant 0 : index
    %c82 = arith.constant 82 : index
    %30 = vector.load %arg6[%c0_36, %c82] : memref<8x512xf32, #tpu.memory_space<vmem>>, vector<8x384xf32>
    %c96 = arith.constant 96 : index
    %c0_37 = arith.constant 0 : index
    %31 = vector.load %arg7[%c96, %c0_37] : memref<120x384xf32, #tpu.memory_space<vmem>>, vector<8x384xf32>
    tpu.vector_store %arg7[%c96, %c0_37], %30 {strides = array<i32>} : memref<120x384xf32, #tpu.memory_space<vmem>>, vector<8x384xf32>,
    %c0_38 = arith.constant 0 : index
    %c83 = arith.constant 83 : index
    %32 = vector.load %arg6[%c0_38, %c83] : memref<8x512xf32, #tpu.memory_space<vmem>>, vector<8x384xf32>
    %c104 = arith.constant 104 : index
    %c0_39 = arith.constant 0 : index
    %33 = vector.load %arg7[%c104, %c0_39] : memref<120x384xf32, #tpu.memory_space<vmem>>, vector<8x384xf32>
    tpu.vector_store %arg7[%c104, %c0_39], %32 {strides = array<i32>} : memref<120x384xf32, #tpu.memory_space<vmem>>, vector<8x384xf32>,
    %c0_40 = arith.constant 0 : index
    %c84 = arith.constant 84 : index
    %34 = vector.load %arg6[%c0_40, %c84] : memref<8x512xf32, #tpu.memory_space<vmem>>, vector<8x384xf32>
    %c112 = arith.constant 112 : index
    %c0_41 = arith.constant 0 : index
    %35 = vector.load %arg7[%c112, %c0_41] : memref<120x384xf32, #tpu.memory_space<vmem>>, vector<8x384xf32>
    tpu.vector_store %arg7[%c112, %c0_41], %34 {strides = array<i32>} : memref<120x384xf32, #tpu.memory_space<vmem>>, vector<8x384xf32>,
    %c0_42 = arith.constant 0 : index
    %c0_43 = arith.constant 0 : index
    %36 = vector.load %arg4[%c0_42, %c0_43] : memref<8x120xf32, #tpu.memory_space<vmem>>, vector<8x120xf32>
    %c0_44 = arith.constant 0 : index
    %c0_45 = arith.constant 0 : index
    %37 = vector.load %arg7[%c0_44, %c0_45] : memref<120x384xf32, #tpu.memory_space<vmem>>, vector<120x384xf32>
    %cst = arith.constant dense<0.000000e+00> : vector<8x384xf32>
    %38 = tpu.matmul %36, %37, %cst {dimension_numbers = #tpu.dot_dimension_numbers<[1], [0], [0], [1], [0, 0, 1, 1], [], []>} : vector<8x120xf32>, vector<120x384xf32>, vector<8x384xf32> -> vector<8x384xf32>
    %c0_46 = arith.constant 0 : index
    %c0_47 = arith.constant 0 : index
    %c0_48 = arith.constant 0 : index
    %39 = vector.load %arg5[%c0_46, %c0_47, %c0_48] : memref<1x8x384xf32, #tpu.memory_space<vmem>>, vector<1x8x384xf32>
    %40 = vector.shape_cast %39 : vector<1x8x384xf32> to vector<8x384xf32>
    %41 = vector.shape_cast %38 : vector<8x384xf32> to vector<1x8x384xf32>
    tpu.vector_store %arg5[%c0_46, %c0_47, %c0_48], %41 {strides = array<i32>} : memref<1x8x384xf32, #tpu.memory_space<vmem>>, vector<1x8x384xf32>,
    return
  }
  func.func @transform_0(%arg0: i32, %arg1: i32) -> (i32, i32, i32) {
    %c0_i32 = arith.constant 0 : i32
    %c0_i32_0 = arith.constant 0 : i32
    return %arg0, %c0_i32, %arg1 : i32, i32, i32
  }
  func.func @transform_1(%arg0: i32, %arg1: i32) -> (i32, i32, i32) {
    %c0_i32 = arith.constant 0 : i32
    %c0_i32_0 = arith.constant 0 : i32
    return %arg0, %c0_i32, %arg1 : i32, i32, i32
  }
  func.func @transform_2(%arg0: i32, %arg1: i32) -> (i32, i32) {
    %c0_i32 = arith.constant 0 : i32
    %c0_i32_0 = arith.constant 0 : i32
    %c0_i32_1 = arith.constant 0 : i32
    return %c0_i32, %c0_i32_0 : i32, i32
  }
  func.func @transform_3(%arg0: i32, %arg1: i32) -> (i32, i32, i32) {
    %c0_i32 = arith.constant 0 : i32
    %c0_i32_0 = arith.constant 0 : i32
    return %arg0, %c0_i32, %arg1 : i32, i32, i32
  }
}

</mosaic_0001>

<llo_original>
// kernel: tpu_custom_call.1
$region0: #{tpu_custom_call.1}
  #allocation0 [shape = 'u32[]', space=smem, size = 0x4, offset = 0x4, fixed_abs, tag = 'smem constant byte address 0x4 - core index']
  #allocation1 [shape = 'u32[144,128]{1,0:T(1,128)}', space=vmem, size = 0x12000, scoped, tag = 'internal scratch']
  #allocation2 [shape = 'f32[8,512]{1,0:T(8,128)}', space=vmem, size = 0x4000, scoped, tag = 'scratch operand']
  #allocation3 [shape = 'f32[120,384]{1,0:T(8,128)}', space=vmem, size = 0x2d000, scoped, tag = 'scratch operand']
  %s0 = inlined_call_operand.hbm [shape: f32[2,8,384], index: 0, kind: input, shape index: {}]
  %s1 = inlined_call_operand.hbm [shape: f32[2,8,128], index: 1, kind: input, shape index: {}]
  %s2 = inlined_call_operand.hbm [shape: f32[8,120], index: 2, kind: input, shape index: {}]
  %s3 = inlined_call_operand.hbm [shape: f32[2,8,384], index: 3, kind: output, shape index: {}]
  %s4 = sld [smem:[#allocation0]]
  $region57: #{tpu_custom_call.1} parent=0
    _
  %s6 = ssub.s32 1, %s4
  %s7 = scalar_select 0, %s6, %s4
  $region1: #{tpu_custom_call.1} parent=0
    #allocation4 [shape = 'u8[24576]{0}', space=vmem, size = 0x6000, scoped, tag = 'input window, operand 0']
    #allocation5 [shape = 's32[2]{0}', space=sflag, size = 0x8, scoped, tag = 'scoped memory for tpu_custom_call.1']
    #allocation6 [shape = 's32[2]{0}', space=sflag, size = 0x8, scoped, tag = 'scoped memory for tpu_custom_call.1']
    #allocation7 [shape = 'u8[8192]{0}', space=vmem, size = 0x2000, scoped, tag = 'input window, operand 1']
    #allocation8 [shape = 's32[2]{0}', space=sflag, size = 0x8, scoped, tag = 'scoped memory for tpu_custom_call.1']
    #allocation9 [shape = 'u8[4096]{0}', space=vmem, size = 0x1000, scoped, tag = 'input window, operand 2, single buffered']
    #allocation10 [shape = 'u8[24576]{0}', space=vmem, size = 0x6000, scoped, tag = 'output window, operand 0']
    %8 = vsyncpa [#allocation5], 0
    %s9 = scalar_lea.sflag [#allocation5], 1
    %10 = vsyncpa %s9, 0
    %11 = vsyncpa [#allocation8], 0
    %s12 = scalar_lea.sflag [#allocation8], 1
    %13 = vsyncpa %s12, 0
    %14 = vsyncpa [#allocation6], 0
    %s15 = scalar_lea.sflag [#allocation6], 1
    %16 = vsyncpa %s15, 0
    loop: start=0, step=1, limit=4
    $region2: #{tpu_custom_call.1} parent=1 // loop_pre_header
      _
    $region3: #{tpu_custom_call.1} parent=1 // loop_header
      %s18 = sphi 0, %s22
      %p19 = scmp.ge.s32.totalorder %s18, 4
      %s25 = sphi 0, %s37
      %s26 = sphi 0, %s33
      %s27 = sphi 0, %s25
      %s28 = sphi 0, %s26
      %s29 = sphi 0, %s27
      %s30 = sphi 0, %s28
      %s42 = sphi 0, %s44
      %s45 = sphi 0, %s42
      %s46 = sphi 0, %s45
      %s62 = sphi 0, %s46
      %s70 = sphi 0, %s72
      %s73 = sphi 0, %s70
      %s74 = sphi 0, %s73
      %s90 = sphi 0, %s74
      %s94 = sphi 0, %s94
      %s96 = sphi 0, %s94
      %s97 = sphi 0, %s96
      %s111 = sphi 0, %s97
      %s119 = sphi 0, %s121
      %s122 = sphi 0, %s119
      %s123 = sphi 0, %s122
      %s139 = sphi 0, %s123
    $region4: #{tpu_custom_call.1} parent=1 // loop_header_branch
      %21 = sbr.rel (%p19) target = $region8
    $region5: #{tpu_custom_call.1} parent=1 // loop_body
      %s23 = ssub.s32 %s18, 1
      %s24 = ssub.s32 %s18, 2
      %s31 = sadd.s32 1, %s26
      %p32 = scmp.ge.s32.totalorder %s31, 1
      %s33 = scalar_select %p32, 0, %s31
      %s34 = sadd.s32 1, %s25
      %s35 = scalar_select %p32, %s34, %s25
      %p36 = scmp.ge.s32.totalorder %s35, 2
      %s37 = scalar_select %p36, 0, %s35
      %s38 = ssub.s32 %s25, %s37
      %s39 = ssub.s32 %s26, %s33
      %s40 = sor.u32 %s38, %s39
      %p41 = scmp.eq.s32.totalorder %s40, 0
      %s43 = sadd.s32 %s42, 1
      %s44 = scalar_select %p41, %s42, %s43
      %p47 = pneg %p41
      %p48 = scmp.eq.s32.totalorder %s18, 1
      %p49 = por %p47, %p48
      %p50 = scmp.ne.s32.totalorder %s42, %s45
      %p51 = scmp.eq.s32.totalorder %s18, 0
      %p52 = por %p50, %p51
      %p53 = scmp.ne.s32.totalorder %s42, %s45
      %p54 = scmp.eq.s32.totalorder %s23, 1
      %p55 = por %p53, %p54
      %p56 = scmp.ne.s32.totalorder %s45, %s46
      %p57 = scmp.eq.s32.totalorder %s23, 0
      %p58 = por %p56, %p57
      %p59 = scmp.ne.s32.totalorder %s45, %s46
      %p60 = scmp.eq.s32.totalorder %s24, 1
      %p61 = por %p59, %p60
      %p63 = scmp.ne.s32.totalorder %s46, %s62
      %p64 = scmp.eq.s32.totalorder %s24, 0
      %p65 = por %p63, %p64
      %s66 = ssub.s32 %s25, %s37
      %s67 = ssub.s32 %s26, %s33
      %s68 = sor.u32 %s66, %s67
      %p69 = scmp.eq.s32.totalorder %s68, 0
      %s71 = sadd.s32 %s70, 1
      %s72 = scalar_select %p69, %s70, %s71
      %p75 = pneg %p69
      %p76 = scmp.eq.s32.totalorder %s18, 1
      %p77 = por %p75, %p76
      %p78 = scmp.ne.s32.totalorder %s70, %s73
      %p79 = scmp.eq.s32.totalorder %s18, 0
      %p80 = por %p78, %p79
      %p81 = scmp.ne.s32.totalorder %s70, %s73
      %p82 = scmp.eq.s32.totalorder %s23, 1
      %p83 = por %p81, %p82
      %p84 = scmp.ne.s32.totalorder %s73, %s74
      %p85 = scmp.eq.s32.totalorder %s23, 0
      %p86 = por %p84, %p85
      %p87 = scmp.ne.s32.totalorder %s73, %s74
      %p88 = scmp.eq.s32.totalorder %s24, 1
      %p89 = por %p87, %p88
      %p91 = scmp.ne.s32.totalorder %s74, %s90
      %p92 = scmp.eq.s32.totalorder %s24, 0
      %p93 = por %p91, %p92
      %s95 = sadd.s32 %s94, 1
      %p98 = scmp.eq.s32.totalorder %s18, 1
      %p99 = scmp.ne.s32.totalorder %s94, %s96
      %p100 = scmp.eq.s32.totalorder %s18, 0
      %p101 = por %p99, %p100
      %p102 = scmp.ne.s32.totalorder %s94, %s96
      %p103 = scmp.eq.s32.totalorder %s23, 1
      %p104 = por %p102, %p103
      %p105 = scmp.ne.s32.totalorder %s96, %s97
      %p106 = scmp.eq.s32.totalorder %s23, 0
      %p107 = por %p105, %p106
      %p108 = scmp.ne.s32.totalorder %s96, %s97
      %p109 = scmp.eq.s32.totalorder %s24, 1
      %p110 = por %p108, %p109
      %p112 = scmp.ne.s32.totalorder %s97, %s111
      %p113 = scmp.eq.s32.totalorder %s24, 0
      %p114 = por %p112, %p113
      %s115 = ssub.s32 %s25, %s37
      %s116 = ssub.s32 %s26, %s33
      %s117 = sor.u32 %s115, %s116
      %p118 = scmp.eq.s32.totalorder %s117, 0
      %s120 = sadd.s32 %s119, 1
      %s121 = scalar_select %p118, %s119, %s120
      %p124 = pneg %p118
      %p125 = scmp.eq.s32.totalorder %s18, 1
      %p126 = por %p124, %p125
      %p127 = scmp.ne.s32.totalorder %s119, %s122
      %p128 = scmp.eq.s32.totalorder %s18, 0
      %p129 = por %p127, %p128
      %p130 = scmp.ne.s32.totalorder %s119, %s122
      %p131 = scmp.eq.s32.totalorder %s23, 1
      %p132 = por %p130, %p131
      %p133 = scmp.ne.s32.totalorder %s122, %s123
      %p134 = scmp.eq.s32.totalorder %s23, 0
      %p135 = por %p133, %p134
      %p136 = scmp.ne.s32.totalorder %s122, %s123
      %p137 = scmp.eq.s32.totalorder %s24, 1
      %p138 = por %p136, %p137
      %p140 = scmp.ne.s32.totalorder %s123, %s139
      %p141 = scmp.eq.s32.totalorder %s24, 0
      %p142 = por %p140, %p141
      %p143 = scmp.le.s32.totalorder 1, %s18
      %p144 = scmp.lt.s32.totalorder %s18, 3
      %p145 = pnand %p143, %p144
      %p146 = pneg %p145
      // Predicated region
      $region9: #{tpu_custom_call.1} parent=5 // pred_check
        _
      $region10: #{tpu_custom_call.1} parent=5 // pred_check_branch
        %148 = sbr.rel (%p145) target = $region12
      $region11: #{tpu_custom_call.1} parent=5 // pred_region
        %s149 = ssub.s32 %s18, 1
        // Predicated region
        $region13: #{tpu_custom_call.1} parent=11 // pred_check
          %p150 = pneg %p107
        $region14: #{tpu_custom_call.1} parent=11 // pred_check_branch
          %152 = sbr.rel (%p150) target = $region16
        $region15: #{tpu_custom_call.1} parent=11 // pred_region
          %s154 = ssub.s32 128, 128
          %155 = vsyncadd [#allocation8], %s154
          %s157 = sshll.u32 [#allocation9], 4
          %s158 = int_to_ptr.vmem [resolvable:$true] %s157
          %160 = dma.hbm_to_vmem [thread:$0]  %s2, 128, %s158, [#allocation8]
        $region16: #{tpu_custom_call.1} parent=11 // pred_fallthru
          _
      $region12: #{tpu_custom_call.1} parent=5 // pred_fallthru
        _
      %p161 = scmp.lt.s32.totalorder %s18, 2
      // Predicated region
      $region17: #{tpu_custom_call.1} parent=5 // pred_check
        %p162 = pneg %p161
      $region18: #{tpu_custom_call.1} parent=5 // pred_check_branch
        %164 = sbr.rel (%p162) target = $region20
      $region19: #{tpu_custom_call.1} parent=5 // pred_region
        // Predicated region
        $region21: #{tpu_custom_call.1} parent=19 // pred_check
          %p165 = pneg %p52
        $region22: #{tpu_custom_call.1} parent=19 // pred_check_branch
          %167 = sbr.rel (%p165) target = $region24
        $region23: #{tpu_custom_call.1} parent=19 // pred_region
          %s168 = sand.u32 %s42, 1
          %s169 = scalar_lea.sflag [#allocation5], %s168
          %s170 = sand.u32 %s42, 1
          %s171 = smul.addr %s170, 24
          %s172 = scalar_lea.vmem [#allocation4], %s171
          %s173 = smul.u32 3, %s26
          %s175 = ssub.s32 384, 384
          %176 = vsyncadd %s169, %s175
          %s177 = smul.addr %s25, 3
          %s178 = sadd.s32 %s173, %s177
          %s179 = smul.addr %s178, 128
          %s180 = scalar_lea.hbm %s0, %s179
          %s182 = sshll.u32 %s172, 4
          %s183 = int_to_ptr.vmem [resolvable:$true] %s182
          %185 = dma.hbm_to_vmem [thread:$0]  %s180, 384, %s183, %s169
        $region24: #{tpu_custom_call.1} parent=19 // pred_fallthru
          _
        // Predicated region
        $region25: #{tpu_custom_call.1} parent=19 // pred_check
          %p186 = pneg %p80
        $region26: #{tpu_custom_call.1} parent=19 // pred_check_branch
          %188 = sbr.rel (%p186) target = $region28
        $region27: #{tpu_custom_call.1} parent=19 // pred_region
          %s189 = sand.u32 %s18, 1
          %s190 = scalar_lea.sflag [#allocation8], %s189
          %s191 = sand.u32 %s70, 1
          %s192 = smul.addr %s191, 8
          %s193 = scalar_lea.vmem [#allocation7], %s192
          %s195 = ssub.s32 128, 128
          %196 = vsyncadd %s190, %s195
          %s197 = sadd.s32 %s26, %s25
          %s198 = smul.addr %s197, 128
          %s199 = scalar_lea.hbm %s1, %s198
          %s201 = sshll.u32 %s193, 4
          %s202 = int_to_ptr.vmem [resolvable:$true] %s201
          %204 = dma.hbm_to_vmem [thread:$0]  %s199, 128, %s202, %s190
        $region28: #{tpu_custom_call.1} parent=19 // pred_fallthru
          _
      $region20: #{tpu_custom_call.1} parent=5 // pred_fallthru
        _
      %p205 = scmp.le.s32.totalorder 1, %s18
      %p206 = scmp.lt.s32.totalorder %s18, 3
      %p207 = pnand %p205, %p206
      %p208 = pneg %p207
      // Predicated region
      $region29: #{tpu_custom_call.1} parent=5 // pred_check
        _
      $region30: #{tpu_custom_call.1} parent=5 // pred_check_branch
        %210 = sbr.rel (%p207) target = $region32
      $region31: #{tpu_custom_call.1} parent=5 // pred_region
        %s211 = ssub.s32 %s18, 1
        %s212 = sand.u32 %s45, 1
        %s213 = scalar_lea.sflag [#allocation5], %s212
        %s214 = sand.u32 %s45, 1
        %s215 = smul.addr %s214, 24
        %s216 = scalar_lea.vmem [#allocation4], %s215
        // Predicated region
        $region33: #{tpu_custom_call.1} parent=31 // pred_check
          %p217 = pneg %p58
        $region34: #{tpu_custom_call.1} parent=31 // pred_check_branch
          %219 = sbr.rel (%p217) target = $region36
        $region35: #{tpu_custom_call.1} parent=31 // pred_region
          %220 = dma.done %s213, 384
        $region36: #{tpu_custom_call.1} parent=31 // pred_fallthru
          _
        %s221 = sand.u32 %s23, 1
        %s222 = scalar_lea.sflag [#allocation8], %s221
        %s223 = sand.u32 %s73, 1
        %s224 = smul.addr %s223, 8
        %s225 = scalar_lea.vmem [#allocation7], %s224
        // Predicated region
        $region37: #{tpu_custom_call.1} parent=31 // pred_check
          %p226 = pneg %p86
        $region38: #{tpu_custom_call.1} parent=31 // pred_check_branch
          %228 = sbr.rel (%p226) target = $region40
        $region39: #{tpu_custom_call.1} parent=31 // pred_region
          %229 = dma.done %s222, 128
        $region40: #{tpu_custom_call.1} parent=31 // pred_fallthru
          _
        // Predicated region
        $region41: #{tpu_custom_call.1} parent=31 // pred_check
          %p230 = pneg %p107
        $region42: #{tpu_custom_call.1} parent=31 // pred_check_branch
          %232 = sbr.rel (%p230) target = $region44
        $region43: #{tpu_custom_call.1} parent=31 // pred_region
          %233 = dma.done [#allocation8], 128
        $region44: #{tpu_custom_call.1} parent=31 // pred_fallthru
          _
        %s234 = sand.u32 %s45, 1
        %s235 = scalar_lea.sflag [#allocation5], %s234
        %s236 = sand.u32 %s45, 1
        %s237 = smul.addr %s236, 24
        %s238 = scalar_lea.vmem [#allocation4], %s237
        %p239 = pneg %p58
        %p240 = pneg %p55
        %s241 = sand.u32 %s23, 1
        %s242 = scalar_lea.sflag [#allocation8], %s241
        %s243 = sand.u32 %s73, 1
        %s244 = smul.addr %s243, 8
        %s245 = scalar_lea.vmem [#allocation7], %s244
        %p246 = pneg %p86
        %p247 = pneg %p83
        %p248 = pneg %p107
        %p249 = pneg %p104
        %p250 = pneg %p135
        %p251 = pneg %p132
        %s252 = sand.u32 %s122, 1
        %s253 = scalar_lea.sflag [#allocation6], %s252
        %s254 = sand.u32 %s122, 1
        %s255 = smul.addr %s254, 24
        %s256 = scalar_lea.vmem [#allocation10], %s255
        %s257 = smul.u32 3, %s28
        %s258 = smul.u32 3, %s28
        %v259 = vld [vmem:[%s216] sm:$0xff]
        %v260 = vld [vmem:[%s216 + $0x8] sm:$0xff]
        %v261 = vld [vmem:[%s216 + $0x10] sm:$0xff]
        %262 = vst [vmem:[#allocation2] sm:$0xff] %v259
        %263 = vst [vmem:[#allocation2 + $0x8] sm:$0xff] %v260
        %264 = vst [vmem:[#allocation2 + $0x10] sm:$0xff] %v261
        %v265 = vld [vmem:[%s225] sm:$0xff]
        %266 = vst [vmem:[#allocation2 + $0x18] sm:$0xff] %v265
        %v267 = vld [vmem:[#allocation2] sm:$0xff]
        %v268 = vld [vmem:[#allocation2 + $0x8] sm:$0xff]
        %v269 = vld [vmem:[#allocation2 + $0x10] sm:$0xff]
        %270 = vst [vmem:[#allocation3] sm:$0xff] %v267
        %271 = vst [vmem:[#allocation3 + $0x8] sm:$0xff] %v268
        %272 = vst [vmem:[#allocation3 + $0x10] sm:$0xff] %v269
        %v273 = vld [vmem:[#allocation2] sm:$0xff]
        %v274 = vld [vmem:[#allocation2 + $0x8] sm:$0xff]
        %v275 = vld [vmem:[#allocation2 + $0x10] sm:$0xff]
        %v276 = vld [vmem:[#allocation2 + $0x18] sm:$0xff]
        %281 = vrot.lane.b32.xlu0 %v273, 127
        %v282 = vpop.permute.xlu0 %281
        %283 = vrot.lane.b32.xlu0 %v274, 127
        %v284 = vpop.permute.xlu0 %283
        %285 = vrot.lane.b32.xlu0 %v275, 127
        %v286 = vpop.permute.xlu0 %285
        %287 = vrot.lane.b32.xlu0 %v276, 127
        %v288 = vpop.permute.xlu0 %287
        %vm289 = vcmask 1039360
        %v290 = vsel %vm289, %v282, %v284
        %v291 = vsel %vm289, %v284, %v286
        %v292 = vsel %vm289, %v286, %v288
        %296 = vst [vmem:[#allocation3 + $0x18] sm:$0xff] %v290
        %297 = vst [vmem:[#allocation3 + $0x20] sm:$0xff] %v291
        %298 = vst [vmem:[#allocation3 + $0x28] sm:$0xff] %v292
        %v299 = vld [vmem:[#allocation2] sm:$0xff]
        %v300 = vld [vmem:[#allocation2 + $0x8] sm:$0xff]
        %v301 = vld [vmem:[#allocation2 + $0x10] sm:$0xff]
        %v302 = vld [vmem:[#allocation2 + $0x18] sm:$0xff]
        %307 = vrot.lane.b32.xlu0 %v299, 126
        %v308 = vpop.permute.xlu0 %307
        %309 = vrot.lane.b32.xlu0 %v300, 126
        %v310 = vpop.permute.xlu0 %309
        %311 = vrot.lane.b32.xlu0 %v301, 126
        %v312 = vpop.permute.xlu0 %311
        %313 = vrot.lane.b32.xlu0 %v302, 126
        %v314 = vpop.permute.xlu0 %313
        %vm315 = vcmask 1031168
        %v316 = vsel %vm315, %v308, %v310
        %v317 = vsel %vm315, %v310, %v312
        %v318 = vsel %vm315, %v312, %v314
        %322 = vst [vmem:[#allocation3 + $0x30] sm:$0xff] %v316
        %323 = vst [vmem:[#allocation3 + $0x38] sm:$0xff] %v317
        %324 = vst [vmem:[#allocation3 + $0x40] sm:$0xff] %v318
        %v325 = vld [vmem:[#allocation2] sm:$0xff]
        %v326 = vld [vmem:[#allocation2 + $0x8] sm:$0xff]
        %v327 = vld [vmem:[#allocation2 + $0x10] sm:$0xff]
        %v328 = vld [vmem:[#allocation2 + $0x18] sm:$0xff]
        %333 = vrot.lane.b32.xlu0 %v325, 125
        %v334 = vpop.permute.xlu0 %333
        %335 = vrot.lane.b32.xlu0 %v326, 125
        %v336 = vpop.permute.xlu0 %335
        %337 = vrot.lane.b32.xlu0 %v327, 125
        %v338 = vpop.permute.xlu0 %337
        %339 = vrot.lane.b32.xlu0 %v328, 125
        %v340 = vpop.permute.xlu0 %339
        %vm341 = vcmask 1022976
        %v342 = vsel %vm341, %v334, %v336
        %v343 = vsel %vm341, %v336, %v338
        %v344 = vsel %vm341, %v338, %v340
        %348 = vst [vmem:[#allocation3 + $0x48] sm:$0xff] %v342
        %349 = vst [vmem:[#allocation3 + $0x50] sm:$0xff] %v343
        %350 = vst [vmem:[#allocation3 + $0x58] sm:$0xff] %v344
        %v351 = vld [vmem:[#allocation2] sm:$0xff]
        %v352 = vld [vmem:[#allocation2 + $0x8] sm:$0xff]
        %v353 = vld [vmem:[#allocation2 + $0x10] sm:$0xff]
        %v354 = vld [vmem:[#allocation2 + $0x18] sm:$0xff]
        %359 = vrot.lane.b32.xlu0 %v351, 124
        %v360 = vpop.permute.xlu0 %359
        %361 = vrot.lane.b32.xlu0 %v352, 124
        %v362 = vpop.permute.xlu0 %361
        %363 = vrot.lane.b32.xlu0 %v353, 124
        %v364 = vpop.permute.xlu0 %363
        %365 = vrot.lane.b32.xlu0 %v354, 124
        %v366 = vpop.permute.xlu0 %365
        %vm367 = vcmask 1014784
        %v368 = vsel %vm367, %v360, %v362
        %v369 = vsel %vm367, %v362, %v364
        %v370 = vsel %vm367, %v364, %v366
        %374 = vst [vmem:[#allocation3 + $0x60] sm:$0xff] %v368
        %375 = vst [vmem:[#allocation3 + $0x68] sm:$0xff] %v369
        %376 = vst [vmem:[#allocation3 + $0x70] sm:$0xff] %v370
        %v377 = vld [vmem:[#allocation2] sm:$0xff]
        %v378 = vld [vmem:[#allocation2 + $0x8] sm:$0xff]
        %v379 = vld [vmem:[#allocation2 + $0x10] sm:$0xff]
        %v380 = vld [vmem:[#allocation2 + $0x18] sm:$0xff]
        %385 = vrot.lane.b32.xlu0 %v377, 88
        %v386 = vpop.permute.xlu0 %385
        %387 = vrot.lane.b32.xlu0 %v378, 88
        %v388 = vpop.permute.xlu0 %387
        %389 = vrot.lane.b32.xlu0 %v379, 88
        %v390 = vpop.permute.xlu0 %389
        %391 = vrot.lane.b32.xlu0 %v380, 88
        %v392 = vpop.permute.xlu0 %391
        %vm393 = vcmask 719872
        %v394 = vsel %vm393, %v386, %v388
        %v395 = vsel %vm393, %v388, %v390
        %v396 = vsel %vm393, %v390, %v392
        %400 = vst [vmem:[#allocation3 + $0x78] sm:$0xff] %v394
        %401 = vst [vmem:[#allocation3 + $0x80] sm:$0xff] %v395
        %402 = vst [vmem:[#allocation3 + $0x88] sm:$0xff] %v396
        %v403 = vld [vmem:[#allocation2] sm:$0xff]
        %v404 = vld [vmem:[#allocation2 + $0x8] sm:$0xff]
        %v405 = vld [vmem:[#allocation2 + $0x10] sm:$0xff]
        %v406 = vld [vmem:[#allocation2 + $0x18] sm:$0xff]
        %411 = vrot.lane.b32.xlu0 %v403, 87
        %v412 = vpop.permute.xlu0 %411
        %413 = vrot.lane.b32.xlu0 %v404, 87
        %v414 = vpop.permute.xlu0 %413
        %415 = vrot.lane.b32.xlu0 %v405, 87
        %v416 = vpop.permute.xlu0 %415
        %417 = vrot.lane.b32.xlu0 %v406, 87
        %v418 = vpop.permute.xlu0 %417
        %vm419 = vcmask 711680
        %v420 = vsel %vm419, %v412, %v414
        %v421 = vsel %vm419, %v414, %v416
        %v422 = vsel %vm419, %v416, %v418
        %426 = vst [vmem:[#allocation3 + $0x90] sm:$0xff] %v420
        %427 = vst [vmem:[#allocation3 + $0x98] sm:$0xff] %v421
        %428 = vst [vmem:[#allocation3 + $0xa0] sm:$0xff] %v422
        %v429 = vld [vmem:[#allocation2] sm:$0xff]
        %v430 = vld [vmem:[#allocation2 + $0x8] sm:$0xff]
        %v431 = vld [vmem:[#allocation2 + $0x10] sm:$0xff]
        %v432 = vld [vmem:[#allocation2 + $0x18] sm:$0xff]
        %437 = vrot.lane.b32.xlu0 %v429, 86
        %v438 = vpop.permute.xlu0 %437
        %439 = vrot.lane.b32.xlu0 %v430, 86
        %v440 = vpop.permute.xlu0 %439
        %441 = vrot.lane.b32.xlu0 %v431, 86
        %v442 = vpop.permute.xlu0 %441
        %443 = vrot.lane.b32.xlu0 %v432, 86
        %v444 = vpop.permute.xlu0 %443
        %vm445 = vcmask 703488
        %v446 = vsel %vm445, %v438, %v440
        %v447 = vsel %vm445, %v440, %v442
        %v448 = vsel %vm445, %v442, %v444
        %452 = vst [vmem:[#allocation3 + $0xa8] sm:$0xff] %v446
        %453 = vst [vmem:[#allocation3 + $0xb0] sm:$0xff] %v447
        %454 = vst [vmem:[#allocation3 + $0xb8] sm:$0xff] %v448
        %v455 = vld [vmem:[#allocation2] sm:$0xff]
        %v456 = vld [vmem:[#allocation2 + $0x8] sm:$0xff]
        %v457 = vld [vmem:[#allocation2 + $0x10] sm:$0xff]
        %v458 = vld [vmem:[#allocation2 + $0x18] sm:$0xff]
        %463 = vrot.lane.b32.xlu0 %v455, 85
        %v464 = vpop.permute.xlu0 %463
        %465 = vrot.lane.b32.xlu0 %v456, 85
        %v466 = vpop.permute.xlu0 %465
        %467 = vrot.lane.b32.xlu0 %v457, 85
        %v468 = vpop.permute.xlu0 %467
        %469 = vrot.lane.b32.xlu0 %v458, 85
        %v470 = vpop.permute.xlu0 %469
        %vm471 = vcmask 695296
        %v472 = vsel %vm471, %v464, %v466
        %v473 = vsel %vm471, %v466, %v468
        %v474 = vsel %vm471, %v468, %v470
        %478 = vst [vmem:[#allocation3 + $0xc0] sm:$0xff] %v472
        %479 = vst [vmem:[#allocation3 + $0xc8] sm:$0xff] %v473
        %480 = vst [vmem:[#allocation3 + $0xd0] sm:$0xff] %v474
        %v481 = vld [vmem:[#allocation2] sm:$0xff]
        %v482 = vld [vmem:[#allocation2 + $0x8] sm:$0xff]
        %v483 = vld [vmem:[#allocation2 + $0x10] sm:$0xff]
        %v484 = vld [vmem:[#allocation2 + $0x18] sm:$0xff]
        %489 = vrot.lane.b32.xlu0 %v481, 84
        %v490 = vpop.permute.xlu0 %489
        %491 = vrot.lane.b32.xlu0 %v482, 84
        %v492 = vpop.permute.xlu0 %491
        %493 = vrot.lane.b32.xlu0 %v483, 84
        %v494 = vpop.permute.xlu0 %493
        %495 = vrot.lane.b32.xlu0 %v484, 84
        %v496 = vpop.permute.xlu0 %495
        %vm497 = vcmask 687104
        %v498 = vsel %vm497, %v490, %v492
        %v499 = vsel %vm497, %v492, %v494
        %v500 = vsel %vm497, %v494, %v496
        %504 = vst [vmem:[#allocation3 + $0xd8] sm:$0xff] %v498
        %505 = vst [vmem:[#allocation3 + $0xe0] sm:$0xff] %v499
        %506 = vst [vmem:[#allocation3 + $0xe8] sm:$0xff] %v500
        %v507 = vld [vmem:[#allocation2] sm:$0xff]
        %v508 = vld [vmem:[#allocation2 + $0x8] sm:$0xff]
        %v509 = vld [vmem:[#allocation2 + $0x10] sm:$0xff]
        %v510 = vld [vmem:[#allocation2 + $0x18] sm:$0xff]
        %515 = vrot.lane.b32.xlu0 %v507, 48
        %v516 = vpop.permute.xlu0 %515
        %517 = vrot.lane.b32.xlu0 %v508, 48
        %v518 = vpop.permute.xlu0 %517
        %519 = vrot.lane.b32.xlu0 %v509, 48
        %v520 = vpop.permute.xlu0 %519
        %521 = vrot.lane.b32.xlu0 %v510, 48
        %v522 = vpop.permute.xlu0 %521
        %vm523 = vcmask 392192
        %v524 = vsel %vm523, %v516, %v518
        %v525 = vsel %vm523, %v518, %v520
        %v526 = vsel %vm523, %v520, %v522
        %530 = vst [vmem:[#allocation3 + $0xf0] sm:$0xff] %v524
        %531 = vst [vmem:[#allocation3 + $0xf8] sm:$0xff] %v525
        %532 = vst [vmem:[#allocation3 + $0x100] sm:$0xff] %v526
        %v533 = vld [vmem:[#allocation2] sm:$0xff]
        %v534 = vld [vmem:[#allocation2 + $0x8] sm:$0xff]
        %v535 = vld [vmem:[#allocation2 + $0x10] sm:$0xff]
        %v536 = vld [vmem:[#allocation2 + $0x18] sm:$0xff]
        %541 = vrot.lane.b32.xlu0 %v533, 47
        %v542 = vpop.permute.xlu0 %541
        %543 = vrot.lane.b32.xlu0 %v534, 47
        %v544 = vpop.permute.xlu0 %543
        %545 = vrot.lane.b32.xlu0 %v535, 47
        %v546 = vpop.permute.xlu0 %545
        %547 = vrot.lane.b32.xlu0 %v536, 47
        %v548 = vpop.permute.xlu0 %547
        %vm549 = vcmask 384000
        %v550 = vsel %vm549, %v542, %v544
        %v551 = vsel %vm549, %v544, %v546
        %v552 = vsel %vm549, %v546, %v548
        %556 = vst [vmem:[#allocation3 + $0x108] sm:$0xff] %v550
        %557 = vst [vmem:[#allocation3 + $0x110] sm:$0xff] %v551
        %558 = vst [vmem:[#allocation3 + $0x118] sm:$0xff] %v552
        %v559 = vld [vmem:[#allocation2] sm:$0xff]
        %v560 = vld [vmem:[#allocation2 + $0x8] sm:$0xff]
        %v561 = vld [vmem:[#allocation2 + $0x10] sm:$0xff]
        %v562 = vld [vmem:[#allocation2 + $0x18] sm:$0xff]
        %567 = vrot.lane.b32.xlu0 %v559, 46
        %v568 = vpop.permute.xlu0 %567
        %569 = vrot.lane.b32.xlu0 %v560, 46
        %v570 = vpop.permute.xlu0 %569
        %571 = vrot.lane.b32.xlu0 %v561, 46
        %v572 = vpop.permute.xlu0 %571
        %573 = vrot.lane.b32.xlu0 %v562, 46
        %v574 = vpop.permute.xlu0 %573
        %vm575 = vcmask 375808
        %v576 = vsel %vm575, %v568, %v570
        %v577 = vsel %vm575, %v570, %v572
        %v578 = vsel %vm575, %v572, %v574
        %582 = vst [vmem:[#allocation3 + $0x120] sm:$0xff] %v576
        %583 = vst [vmem:[#allocation3 + $0x128] sm:$0xff] %v577
        %584 = vst [vmem:[#allocation3 + $0x130] sm:$0xff] %v578
        %v585 = vld [vmem:[#allocation2] sm:$0xff]
        %v586 = vld [vmem:[#allocation2 + $0x8] sm:$0xff]
        %v587 = vld [vmem:[#allocation2 + $0x10] sm:$0xff]
        %v588 = vld [vmem:[#allocation2 + $0x18] sm:$0xff]
        %593 = vrot.lane.b32.xlu0 %v585, 45
        %v594 = vpop.permute.xlu0 %593
        %595 = vrot.lane.b32.xlu0 %v586, 45
        %v596 = vpop.permute.xlu0 %595
        %597 = vrot.lane.b32.xlu0 %v587, 45
        %v598 = vpop.permute.xlu0 %597
        %599 = vrot.lane.b32.xlu0 %v588, 45
        %v600 = vpop.permute.xlu0 %599
        %vm601 = vcmask 367616
        %v602 = vsel %vm601, %v594, %v596
        %v603 = vsel %vm601, %v596, %v598
        %v604 = vsel %vm601, %v598, %v600
        %608 = vst [vmem:[#allocation3 + $0x138] sm:$0xff] %v602
        %609 = vst [vmem:[#allocation3 + $0x140] sm:$0xff] %v603
        %610 = vst [vmem:[#allocation3 + $0x148] sm:$0xff] %v604
        %v611 = vld [vmem:[#allocation2] sm:$0xff]
        %v612 = vld [vmem:[#allocation2 + $0x8] sm:$0xff]
        %v613 = vld [vmem:[#allocation2 + $0x10] sm:$0xff]
        %v614 = vld [vmem:[#allocation2 + $0x18] sm:$0xff]
        %619 = vrot.lane.b32.xlu0 %v611, 44
        %v620 = vpop.permute.xlu0 %619
        %621 = vrot.lane.b32.xlu0 %v612, 44
        %v622 = vpop.permute.xlu0 %621
        %623 = vrot.lane.b32.xlu0 %v613, 44
        %v624 = vpop.permute.xlu0 %623
        %625 = vrot.lane.b32.xlu0 %v614, 44
        %v626 = vpop.permute.xlu0 %625
        %vm627 = vcmask 359424
        %v628 = vsel %vm627, %v620, %v622
        %v629 = vsel %vm627, %v622, %v624
        %v630 = vsel %vm627, %v624, %v626
        %634 = vst [vmem:[#allocation3 + $0x150] sm:$0xff] %v628
        %635 = vst [vmem:[#allocation3 + $0x158] sm:$0xff] %v629
        %636 = vst [vmem:[#allocation3 + $0x160] sm:$0xff] %v630
        %v637 = vld [vmem:[#allocation9] sm:$0xff]
        %v638 = vld [vmem:[#allocation3] sm:$0xff]
        %v639 = vld [vmem:[#allocation3 + $0x8] sm:$0xff]
        %v640 = vld [vmem:[#allocation3 + $0x10] sm:$0xff]
        %v641 = vld [vmem:[#allocation3 + $0x18] sm:$0xff]
        %v642 = vld [vmem:[#allocation3 + $0x20] sm:$0xff]
        %v643 = vld [vmem:[#allocation3 + $0x28] sm:$0xff]
        %v644 = vld [vmem:[#allocation3 + $0x30] sm:$0xff]
        %v645 = vld [vmem:[#allocation3 + $0x38] sm:$0xff]
        %v646 = vld [vmem:[#allocation3 + $0x40] sm:$0xff]
        %v647 = vld [vmem:[#allocation3 + $0x48] sm:$0xff]
        %v648 = vld [vmem:[#allocation3 + $0x50] sm:$0xff]
        %v649 = vld [vmem:[#allocation3 + $0x58] sm:$0xff]
        %v650 = vld [vmem:[#allocation3 + $0x60] sm:$0xff]
        %v651 = vld [vmem:[#allocation3 + $0x68] sm:$0xff]
        %v652 = vld [vmem:[#allocation3 + $0x70] sm:$0xff]
        %v653 = vld [vmem:[#allocation3 + $0x78] sm:$0xff]
        %v654 = vld [vmem:[#allocation3 + $0x80] sm:$0xff]
        %v655 = vld [vmem:[#allocation3 + $0x88] sm:$0xff]
        %v656 = vld [vmem:[#allocation3 + $0x90] sm:$0xff]
        %v657 = vld [vmem:[#allocation3 + $0x98] sm:$0xff]
        %v658 = vld [vmem:[#allocation3 + $0xa0] sm:$0xff]
        %v659 = vld [vmem:[#allocation3 + $0xa8] sm:$0xff]
        %v660 = vld [vmem:[#allocation3 + $0xb0] sm:$0xff]
        %v661 = vld [vmem:[#allocation3 + $0xb8] sm:$0xff]
        %v662 = vld [vmem:[#allocation3 + $0xc0] sm:$0xff]
        %v663 = vld [vmem:[#allocation3 + $0xc8] sm:$0xff]
        %v664 = vld [vmem:[#allocation3 + $0xd0] sm:$0xff]
        %v665 = vld [vmem:[#allocation3 + $0xd8] sm:$0xff]
        %v666 = vld [vmem:[#allocation3 + $0xe0] sm:$0xff]
        %v667 = vld [vmem:[#allocation3 + $0xe8] sm:$0xff]
        %v668 = vld [vmem:[#allocation3 + $0xf0] sm:$0xff]
        %v669 = vld [vmem:[#allocation3 + $0xf8] sm:$0xff]
        %v670 = vld [vmem:[#allocation3 + $0x100] sm:$0xff]
        %v671 = vld [vmem:[#allocation3 + $0x108] sm:$0xff]
        %v672 = vld [vmem:[#allocation3 + $0x110] sm:$0xff]
        %v673 = vld [vmem:[#allocation3 + $0x118] sm:$0xff]
        %v674 = vld [vmem:[#allocation3 + $0x120] sm:$0xff]
        %v675 = vld [vmem:[#allocation3 + $0x128] sm:$0xff]
        %v676 = vld [vmem:[#allocation3 + $0x130] sm:$0xff]
        %v677 = vld [vmem:[#allocation3 + $0x138] sm:$0xff]
        %v678 = vld [vmem:[#allocation3 + $0x140] sm:$0xff]
        %v679 = vld [vmem:[#allocation3 + $0x148] sm:$0xff]
        %v680 = vld [vmem:[#allocation3 + $0x150] sm:$0xff]
        %v681 = vld [vmem:[#allocation3 + $0x158] sm:$0xff]
        %v682 = vld [vmem:[#allocation3 + $0x160] sm:$0xff]
        %vm683 = vcmask 982016
        %v685 = vsel %vm683, %v637, 0
        %687 = vmatprep.subr.mxu0 0.0
        %688 = vmatpush1.msra.mxu0 0.0
        %689 = vmatprep.subr.mxu0 %v681
        %690 = vmatpush1.msra.mxu0 %v680
        %691 = vmatprep.subr.mxu0 %v678
        %692 = vmatpush1.msra.mxu0 %v677
        %693 = vmatprep.subr.mxu0 %v675
        %694 = vmatpush1.msra.mxu0 %v674
        %695 = vmatprep.subr.mxu0 %v672
        %696 = vmatpush1.msra.mxu0 %v671
        %697 = vmatprep.subr.mxu0 %v669
        %698 = vmatpush1.msra.mxu0 %v668
        %699 = vmatprep.subr.mxu0 %v666
        %700 = vmatpush1.msra.mxu0 %v665
        %701 = vmatprep.subr.mxu0 %v663
        %702 = vmatpush1.msra.mxu0 %v662
        %703 = vmatprep.subr.mxu0 %v660
        %704 = vmatpush1.msra.mxu0 %v659
        %705 = vmatprep.subr.mxu0 %v657
        %706 = vmatpush1.msra.mxu0 %v656
        %707 = vmatprep.subr.mxu0 %v654
        %708 = vmatpush1.msra.mxu0 %v653
        %709 = vmatprep.subr.mxu0 %v651
        %710 = vmatpush1.msra.mxu0 %v650
        %711 = vmatprep.subr.mxu0 %v648
        %712 = vmatpush1.msra.mxu0 %v647
        %713 = vmatprep.subr.mxu0 %v645
        %714 = vmatpush1.msra.mxu0 %v644
        %715 = vmatprep.subr.mxu0 %v642
        %716 = vmatpush1.msra.mxu0 %v641
        %717 = vmatprep.subr.mxu0 %v639
        %718 = vmatpush1.msra.mxu0 %v638
        %719 = vmatprep.subr.mxu0 0.0
        %720 = vmatpush2.msra.mxu0 0.0
        %721 = vmatprep.subr.mxu0 0.0
        %722 = vmatpush2.msra.mxu0 0.0
        %723 = vmatprep.subr.mxu0 0.0
        %724 = vmatpush2.msra.mxu0 0.0
        %725 = vmatprep.subr.mxu0 0.0
        %726 = vmatpush2.msra.mxu0 0.0
        %727 = vmatprep.subr.mxu0 0.0
        %728 = vmatpush2.msra.mxu0 0.0
        %729 = vmatprep.subr.mxu0 0.0
        %730 = vmatpush2.msra.mxu0 0.0
        %731 = vmatprep.subr.mxu0 0.0
        %732 = vmatpush2.msra.mxu0 0.0
        %733 = vmatprep.subr.mxu0 0.0
        %734 = vmatpush2.msra.mxu0 0.0
        %735 = vmatprep.subr.mxu0 0.0
        %736 = vmatpush2.msra.mxu0 0.0
        %737 = vmatprep.subr.mxu0 0.0
        %738 = vmatpush2.msra.mxu0 0.0
        %739 = vmatprep.subr.mxu0 0.0
        %740 = vmatpush2.msra.mxu0 0.0
        %741 = vmatprep.subr.mxu0 0.0
        %742 = vmatpush2.msra.mxu0 0.0
        %743 = vmatprep.subr.mxu0 0.0
        %744 = vmatpush2.msra.mxu0 0.0
        %745 = vmatprep.subr.mxu0 0.0
        %746 = vmatpush2.msra.mxu0 0.0
        %747 = vmatprep.subr.mxu0 0.0
        %748 = vmatpush2.msra.mxu0 0.0
        %749 = vmatprep.subr.mxu0 0.0
        %750 = vmatpush2.msra.mxu0 0.0
        %751 = vmatprep.mubr.f32.mxu0 0.0
        %752 = vmatmul.mubr.f32.gmra.mxu0 %v685
        %v753 = vpop.f32.mrf.mxu0
        %v754 = vadd.f32 0.0, %v753
        %v755 = vpop.f32.mrf.mxu0
        %v756 = vadd.f32 0.0, %v755
        %757 = vdwg.mxu0
        %758 = vmatprep.subr.mxu0 0.0
        %759 = vmatpush1.msra.mxu0 0.0
        %760 = vmatprep.subr.mxu0 0.0
        %761 = vmatpush1.msra.mxu0 %v682
        %762 = vmatprep.subr.mxu0 0.0
        %763 = vmatpush1.msra.mxu0 %v679
        %764 = vmatprep.subr.mxu0 0.0
        %765 = vmatpush1.msra.mxu0 %v676
        %766 = vmatprep.subr.mxu0 0.0
        %767 = vmatpush1.msra.mxu0 %v673
        %768 = vmatprep.subr.mxu0 0.0
        %769 = vmatpush1.msra.mxu0 %v670
        %770 = vmatprep.subr.mxu0 0.0
        %771 = vmatpush1.msra.mxu0 %v667
        %772 = vmatprep.subr.mxu0 0.0
        %773 = vmatpush1.msra.mxu0 %v664
        %774 = vmatprep.subr.mxu0 0.0
        %775 = vmatpush1.msra.mxu0 %v661
        %776 = vmatprep.subr.mxu0 0.0
        %777 = vmatpush1.msra.mxu0 %v658
        %778 = vmatprep.subr.mxu0 0.0
        %779 = vmatpush1.msra.mxu0 %v655
        %780 = vmatprep.subr.mxu0 0.0
        %781 = vmatpush1.msra.mxu0 %v652
        %782 = vmatprep.subr.mxu0 0.0
        %783 = vmatpush1.msra.mxu0 %v649
        %784 = vmatprep.subr.mxu0 0.0
        %785 = vmatpush1.msra.mxu0 %v646
        %786 = vmatprep.subr.mxu0 0.0
        %787 = vmatpush1.msra.mxu0 %v643
        %788 = vmatprep.subr.mxu0 0.0
        %789 = vmatpush1.msra.mxu0 %v640
        %790 = vmatprep.subr.mxu0 0.0
        %791 = vmatpush2.msra.mxu0 0.0
        %792 = vmatprep.subr.mxu0 0.0
        %793 = vmatpush2.msra.mxu0 0.0
        %794 = vmatprep.subr.mxu0 0.0
        %795 = vmatpush2.msra.mxu0 0.0
        %796 = vmatprep.subr.mxu0 0.0
        %797 = vmatpush2.msra.mxu0 0.0
        %798 = vmatprep.subr.mxu0 0.0
        %799 = vmatpush2.msra.mxu0 0.0
        %800 = vmatprep.subr.mxu0 0.0
        %801 = vmatpush2.msra.mxu0 0.0
        %802 = vmatprep.subr.mxu0 0.0
        %803 = vmatpush2.msra.mxu0 0.0
        %804 = vmatprep.subr.mxu0 0.0
        %805 = vmatpush2.msra.mxu0 0.0
        %806 = vmatprep.subr.mxu0 0.0
        %807 = vmatpush2.msra.mxu0 0.0
        %808 = vmatprep.subr.mxu0 0.0
        %809 = vmatpush2.msra.mxu0 0.0
        %810 = vmatprep.subr.mxu0 0.0
        %811 = vmatpush2.msra.mxu0 0.0
        %812 = vmatprep.subr.mxu0 0.0
        %813 = vmatpush2.msra.mxu0 0.0
        %814 = vmatprep.subr.mxu0 0.0
        %815 = vmatpush2.msra.mxu0 0.0
        %816 = vmatprep.subr.mxu0 0.0
        %817 = vmatpush2.msra.mxu0 0.0
        %818 = vmatprep.subr.mxu0 0.0
        %819 = vmatpush2.msra.mxu0 0.0
        %820 = vmatprep.subr.mxu0 0.0
        %821 = vmatpush2.msra.mxu0 0.0
        %822 = vmatprep.mubr.f32.mxu0 0.0
        %823 = vmatmul.mubr.f32.gmra.mxu0 %v685
        %v824 = vpop.f32.mrf.mxu0
        %v825 = vadd.f32 0.0, %v824
        %v826 = vpop.f32.mrf.mxu0
        %827 = vdwg.mxu0
        %828 = vst [vmem:[%s256] sm:$0xff] %v754
        %829 = vst [vmem:[%s256 + $0x8] sm:$0xff] %v756
        %830 = vst [vmem:[%s256 + $0x10] sm:$0xff] %v825
        %s831 = sand.u32 %s122, 1
        %s832 = scalar_lea.sflag [#allocation6], %s831
        %s833 = sand.u32 %s122, 1
        %s834 = smul.addr %s833, 24
        %s835 = scalar_lea.vmem [#allocation10], %s834
        // Predicated region
        $region45: #{tpu_custom_call.1} parent=31 // pred_check
          %p836 = pneg %p132
        $region46: #{tpu_custom_call.1} parent=31 // pred_check_branch
          %838 = sbr.rel (%p836) target = $region48
        $region47: #{tpu_custom_call.1} parent=31 // pred_region
          %s839 = smul.u32 3, %s28
          %s841 = ssub.s32 384, 384
          %842 = vsyncadd %s832, %s841
          %s843 = smul.addr %s27, 3
          %s844 = sadd.s32 %s839, %s843
          %s845 = smul.addr %s844, 128
          %s846 = scalar_lea.hbm %s3, %s845
          %s848 = sshll.u32 %s835, 4
          %s849 = int_to_ptr.vmem [resolvable:$true] %s848
          %851 = dma.vmem_to_hbm [thread:$0]  %s849, 384, %s846, %s832
        $region48: #{tpu_custom_call.1} parent=31 // pred_fallthru
          _
      $region32: #{tpu_custom_call.1} parent=5 // pred_fallthru
        _
      %p852 = scmp.le.s32.totalorder 2, %s18
      // Predicated region
      $region49: #{tpu_custom_call.1} parent=5 // pred_check
        %p853 = pneg %p852
      $region50: #{tpu_custom_call.1} parent=5 // pred_check_branch
        %855 = sbr.rel (%p853) target = $region52
      $region51: #{tpu_custom_call.1} parent=5 // pred_region
        %s856 = ssub.s32 %s18, 2
        // Predicated region
        $region53: #{tpu_custom_call.1} parent=51 // pred_check
          %p857 = pneg %p138
        $region54: #{tpu_custom_call.1} parent=51 // pred_check_branch
          %859 = sbr.rel (%p857) target = $region56
        $region55: #{tpu_custom_call.1} parent=51 // pred_region
          %s860 = sand.u32 %s123, 1
          %s861 = scalar_lea.sflag [#allocation6], %s860
          %s862 = sand.u32 %s123, 1
          %s863 = smul.addr %s862, 24
          %s864 = scalar_lea.vmem [#allocation10], %s863
          %865 = dma.done %s861, 384
        $region56: #{tpu_custom_call.1} parent=51 // pred_fallthru
          _
      $region52: #{tpu_custom_call.1} parent=5 // pred_fallthru
        _
    $region6: #{tpu_custom_call.1} parent=1 // loop_footer
      %s22 = sadd.s32 1, %s18
    $region7: #{tpu_custom_call.1} parent=1 // loop_footer_branch
      %17 = sbr.rel target = $region3
    $region8: #{tpu_custom_call.1} parent=1 // loop_exit
      _
    %866 = vsyncpa [#allocation5], 1
    %s867 = scalar_lea.sflag [#allocation5], 1
    %868 = vsyncpa %s867, 1
    %869 = vsyncpa [#allocation8], 1
    %s870 = scalar_lea.sflag [#allocation8], 1
    %871 = vsyncpa %s870, 1
    %872 = vsyncpa [#allocation6], 1
    %s873 = scalar_lea.sflag [#allocation6], 1
    %874 = vsyncpa %s873, 1

</llo_original>
